<compile_context>
chip_gen: v7x
topology: tpu7x:2x2x1
jax: 0.10.0
libtpu: 0.0.40
codegen_flags: <defaults>
</compile_context>

<pallas_src>
import numpy as np
import jax
import jax.numpy as jnp
from jax import lax
from jax.experimental import pallas as pl
from jax.experimental.pallas import tpu as pltpu


def _round_up(x, m):
    return (x + m - 1) // m * m


def _fold_kernel(tgt_ref, x_ref, o_ref):
    # tgt_ref: (KKLp, 1) int32 - flat output pixel (oh*W + ow) each contraction row
    #          scatters into, or -1 for zero-padded rows.
    # x_ref:   (TM, KKLp) f32  - unfolded input rows, contraction dim padded to 128x.
    # o_ref:   (TM, HW)   f32
    kklp = tgt_ref.shape[0]
    hw = o_ref.shape[-1]
    # Build the 0/1 scatter matrix in-register (no HBM traffic for the constant).
    col = lax.broadcasted_iota(jnp.int32, (kklp, hw), 1)
    scat = (col == tgt_ref[...]).astype(jnp.float32)          # (KKLp, HW)
    o_ref[...] = jnp.dot(x_ref[...], scat,
                         preferred_element_type=jnp.float32)


def _fold_reference_np(viewed, output_size, K, stride, dil):
    # Straightforward scatter-add reference of torch.nn.functional.fold.
    Nv, Cin, L = viewed.shape
    H, W = output_size
    C = Cin // (K * K)
    BH = (H - dil * (K - 1) - 1) // stride + 1
    BW = (W - dil * (K - 1) - 1) // stride + 1
    out = np.zeros((Nv, C, H, W), dtype=np.float32)
    for n in range(Nv):
        for c in range(C):
            for kh in range(K):
                for kw in range(K):
                    for bh in range(BH):
                        for bw in range(BW):
                            out[n, c, bh * stride + kh * dil, bw * stride + kw * dil] += \
                                viewed[n, c * K * K + kh * K + kw, bh * BW + bw]
    return out


class Model:
    def __init__(self):
        # nn.Linear(3, 3): only weight.shape[0] is used in forward, but keep
        # deterministic parameters anyway.
        kw, kb = jax.random.split(jax.random.PRNGKey(42))
        bound = 1.0 / np.sqrt(3.0)
        self.linear_weight = jax.random.uniform(kw, (3, 3), jnp.float32, -bound, bound)
        self.linear_bias = jax.random.uniform(kb, (3,), jnp.float32, -bound, bound)

    def forward(self, x1):
        K = self.linear_weight.shape[0]        # kernel_size == stride == dilation == 3
        stride = K
        dil = K
        N0, C0, H, W = x1.shape

        # x1.view(-1, x1.size(-3), x1.size(-1)) -> (N0*H, C0, W)  (row-major regroup)
        viewed = jnp.reshape(x1, (-1, C0, W))
        Nv, Cin, L = viewed.shape
        assert Cin % (K * K) == 0, "fold: channel dim must be divisible by kernel_size**2"
        C_out = Cin // (K * K)
        BH = (H - dil * (K - 1) - 1) // stride + 1
        BW = (W - dil * (K - 1) - 1) // stride + 1
        assert BH * BW == L, "fold: number of sliding blocks must equal last dim"

        KK = K * K
        KKL = KK * L
        HW = H * W
        M = Nv * C_out

        # Pad contraction dim to a lane multiple (144 -> 256); tile & pad M.
        KKLp = _round_up(KKL, 128)
        TM = min(256, _round_up(M, 8))
        M_pad = _round_up(M, TM)

        # (Nv, C_out*K*K, L) -> (Nv*C_out, K*K*L), zero-padded.
        x2d = viewed.reshape(Nv, C_out, KK, L).reshape(M, KKL)
        x2d = jnp.pad(x2d.astype(jnp.float32), ((0, M_pad - M), (0, KKLp - KKL)))

        # Host-side (numpy) scatter targets: contraction row r = (kh*K+kw)*L + bh*BW+bw
        # lands on flat output pixel (stride*bh + dil*kh)*W + (stride*bw + dil*kw).
        r = np.arange(KKLp)
        j, l = r // L, r % L
        kh, kw = j // K, j % K
        bh, bw = l // BW, l % BW
        tgt = (stride * bh + dil * kh) * W + (stride * bw + dil * kw)
        tgt = np.where(r < KKL, tgt, -1).astype(np.int32).reshape(KKLp, 1)

        out2d = pl.pallas_call(
            _fold_kernel,
            out_shape=jax.ShapeDtypeStruct((M_pad, HW), jnp.float32),
            grid=(M_pad // TM,),
            in_specs=[
                pl.BlockSpec((KKLp, 1), lambda i: (0, 0),
                             memory_space=pltpu.MemorySpace.VMEM),
                pl.BlockSpec((TM, KKLp), lambda i: (i, 0),
                             memory_space=pltpu.MemorySpace.VMEM),
            ],
            out_specs=pl.BlockSpec((TM, HW), lambda i: (i, 0),
                                   memory_space=pltpu.MemorySpace.VMEM),
            compiler_params=pltpu.CompilerParams(
                dimension_semantics=("parallel",)),
            cost_estimate=pl.CostEstimate(
                flops=2 * M_pad * KKLp * HW,
                transcendentals=0,
                bytes_accessed=4 * (M_pad * KKLp + KKLp + M_pad * HW)),
        )(jnp.asarray(tgt), x2d)

        return out2d[:M].reshape(Nv, C_out, H, W)


if __name__ == "__main__":
    # Input chosen so the forward is valid:
    #   channels = 9 (divisible by kernel_size**2),
    #   H = W = 16  =>  blocks = 4x4 = 16 == last dim (L).
    x1 = jax.random.normal(jax.random.PRNGKey(0), (2, 9, 16, 16), dtype=jnp.float32)

    model = Model()
    out = jax.block_until_ready(model.forward(x1))

    ref = _fold_reference_np(np.asarray(x1).reshape(-1, 9, 16), (16, 16), 3, 3, 3)
    assert out.shape == ref.shape, (out.shape, ref.shape)
    np.testing.assert_allclose(np.asarray(out), ref, rtol=1e-5, atol=1e-5)
    print("KERNEL_OK")
</pallas_src>

<mosaic_0001>
module attributes {stable_mosaic.version = 11 : i64} {
  func.func @_fold_kernel(%arg0: i32, %arg1: memref<256x1xi32, #tpu.memory_space<vmem>>, %arg2: memref<32x256xf32, #tpu.memory_space<vmem>>, %arg3: memref<32x256xf32, #tpu.memory_space<vmem>>) attributes {dimension_semantics = [#tpu.dimension_semantics<parallel>], iteration_bounds = array<i64: 1>, scalar_prefetch = 0 : i64, scratch_operands = 0 : i64, tpu.core_type = #tpu.core_type<tc>, window_params = [{pipeline_mode = #tpu.pipeline_mode<synchronous>, transform_indices = @transform_0, window_bounds = array<i64: 256, 1>}, {transform_indices = @transform_1, window_bounds = array<i64: 32, 256>}, {transform_indices = @transform_2, window_bounds = array<i64: 32, 256>}]} {
    %0 = tpu.iota {dimensions = array<i32: 1>} : vector<256x256xi32>
    %c0 = arith.constant 0 : index
    %c0_0 = arith.constant 0 : index
    %1 = vector.load %arg1[%c0, %c0_0] : memref<256x1xi32, #tpu.memory_space<vmem>>, vector<256x1xi32>
    %2 = vector.broadcast %1 : vector<256x1xi32> to vector<256x256xi32>
    %3 = arith.cmpi eq, %0, %2 : vector<256x256xi32>
    %4 = arith.extui %3 : vector<256x256xi1> to vector<256x256xi32>
    %5 = arith.sitofp %4 : vector<256x256xi32> to vector<256x256xf32>
    %c0_1 = arith.constant 0 : index
    %c0_2 = arith.constant 0 : index
    %6 = vector.load %arg2[%c0_1, %c0_2] : memref<32x256xf32, #tpu.memory_space<vmem>>, vector<32x256xf32>
    %cst = arith.constant dense<0.000000e+00> : vector<32x256xf32>
    %7 = tpu.matmul %6, %5, %cst {dimension_numbers = #tpu.dot_dimension_numbers<[1], [0], [0], [1], [0, 0, 1, 1], [], []>} : vector<32x256xf32>, vector<256x256xf32>, vector<32x256xf32> -> vector<32x256xf32>
    %c0_3 = arith.constant 0 : index
    %c0_4 = arith.constant 0 : index
    %8 = vector.load %arg3[%c0_3, %c0_4] : memref<32x256xf32, #tpu.memory_space<vmem>>, vector<32x256xf32>
    tpu.vector_store %arg3[%c0_3, %c0_4], %7 {strides = array<i32>} : memref<32x256xf32, #tpu.memory_space<vmem>>, vector<32x256xf32>,
    return
  }
  func.func @transform_0(%arg0: i32) -> (i32, i32) {
    %c0_i32 = arith.constant 0 : i32
    %c0_i32_0 = arith.constant 0 : i32
    %c0_i32_1 = arith.constant 0 : i32
    return %c0_i32, %c0_i32_0 : i32, i32
  }
  func.func @transform_1(%arg0: i32) -> (i32, i32) {
    %c0_i32 = arith.constant 0 : i32
    %c0_i32_0 = arith.constant 0 : i32
    return %arg0, %c0_i32 : i32, i32
  }
  func.func @transform_2(%arg0: i32) -> (i32, i32) {
    %c0_i32 = arith.constant 0 : i32
    %c0_i32_0 = arith.constant 0 : i32
    return %arg0, %c0_i32 : i32, i32
  }
}

</mosaic_0001>

<llo_original>
// kernel: tpu_custom_call.1
$region0: #{tpu_custom_call.1}
  #allocation0 [shape = 'u32[]', space=smem, size = 0x4, offset = 0x4, fixed_abs, tag = 'smem constant byte address 0x4 - core index']
  #allocation1 [shape = 'u32[144,128]{1,0:T(1,128)}', space=vmem, size = 0x12000, scoped, tag = 'internal scratch']
  %s0 = inlined_call_operand.vmem [shape: s32[256,1], index: 0, kind: input, shape index: {}]
  %s1 = inlined_call_operand.vmem [shape: f32[32,256], index: 1, kind: input, shape index: {}]
  %s2 = inlined_call_operand.hbm [shape: f32[32,256], index: 2, kind: output, shape index: {}]
  %s3 = sld [smem:[#allocation0]]
  $region18: #{tpu_custom_call.1} parent=0
    _
  %s5 = ssub.s32 1, %s3
  %s6 = scalar_select 0, %s5, %s3
  $region1: #{tpu_custom_call.1} parent=0
    #allocation2 [shape = 'u8[32768]{0}', space=vmem, size = 0x8000, scoped, tag = 'output window, operand 0, single buffered']
    #allocation3 [shape = 's32[1]{0}', space=sflag, size = 0x4, scoped, tag = 'scoped memory for tpu_custom_call.1']
    %7 = vsyncpa [#allocation3], 0
    // Predicated region
    $region2: #{tpu_custom_call.1} parent=1 // pred_check
      _
    $region3: #{tpu_custom_call.1} parent=1 // pred_check_branch
      %9 = sbr.rel (0) target = $region5
    $region4: #{tpu_custom_call.1} parent=1 // pred_region
      _
    $region5: #{tpu_custom_call.1} parent=1 // pred_fallthru
      _
    // Predicated region
    $region6: #{tpu_custom_call.1} parent=1 // pred_check
      _
    $region7: #{tpu_custom_call.1} parent=1 // pred_check_branch
      %11 = sbr.rel (0) target = $region9
    $region8: #{tpu_custom_call.1} parent=1 // pred_region
      _
    $region9: #{tpu_custom_call.1} parent=1 // pred_fallthru
      _
    %v12 = vlaneseq
    %v13 = vand.u32 %v12, 127
    %v14 = vadd.s32 %v13, 128
    %v15 = vld [vmem:[%s0] sm:$0xff]
    %v16 = vld [vmem:[%s0 + $0x8] sm:$0xff]
    %v17 = vld [vmem:[%s0 + $0x10] sm:$0xff]
    %v18 = vld [vmem:[%s0 + $0x18] sm:$0xff]
    %v19 = vld [vmem:[%s0 + $0x20] sm:$0xff]
    %v20 = vld [vmem:[%s0 + $0x28] sm:$0xff]
    %v21 = vld [vmem:[%s0 + $0x30] sm:$0xff]
    %v22 = vld [vmem:[%s0 + $0x38] sm:$0xff]
    %v23 = vld [vmem:[%s0 + $0x40] sm:$0xff]
    %v24 = vld [vmem:[%s0 + $0x48] sm:$0xff]
    %v25 = vld [vmem:[%s0 + $0x50] sm:$0xff]
    %v26 = vld [vmem:[%s0 + $0x58] sm:$0xff]
    %v27 = vld [vmem:[%s0 + $0x60] sm:$0xff]
    %v28 = vld [vmem:[%s0 + $0x68] sm:$0xff]
    %v29 = vld [vmem:[%s0 + $0x70] sm:$0xff]
    %v30 = vld [vmem:[%s0 + $0x78] sm:$0xff]
    %v31 = vld [vmem:[%s0 + $0x80] sm:$0xff]
    %v32 = vld [vmem:[%s0 + $0x88] sm:$0xff]
    %v33 = vld [vmem:[%s0 + $0x90] sm:$0xff]
    %v34 = vld [vmem:[%s0 + $0x98] sm:$0xff]
    %v35 = vld [vmem:[%s0 + $0xa0] sm:$0xff]
    %v36 = vld [vmem:[%s0 + $0xa8] sm:$0xff]
    %v37 = vld [vmem:[%s0 + $0xb0] sm:$0xff]
    %v38 = vld [vmem:[%s0 + $0xb8] sm:$0xff]
    %v39 = vld [vmem:[%s0 + $0xc0] sm:$0xff]
    %v40 = vld [vmem:[%s0 + $0xc8] sm:$0xff]
    %v41 = vld [vmem:[%s0 + $0xd0] sm:$0xff]
    %v42 = vld [vmem:[%s0 + $0xd8] sm:$0xff]
    %v43 = vld [vmem:[%s0 + $0xe0] sm:$0xff]
    %v44 = vld [vmem:[%s0 + $0xe8] sm:$0xff]
    %v45 = vld [vmem:[%s0 + $0xf0] sm:$0xff]
    %v46 = vld [vmem:[%s0 + $0xf8] sm:$0xff]
    %47 = vset.pattern.permute.xlu0 0
    %48 = vperm.xlu0 %47, %v15
    %v49 = vpop.permute.xlu0 %48
    %50 = vset.pattern.permute.xlu0 0
    %51 = vperm.xlu0 %50, %v16
    %v52 = vpop.permute.xlu0 %51
    %53 = vset.pattern.permute.xlu0 0
    %54 = vperm.xlu0 %53, %v17
    %v55 = vpop.permute.xlu0 %54
    %56 = vset.pattern.permute.xlu0 0
    %57 = vperm.xlu0 %56, %v18
    %v58 = vpop.permute.xlu0 %57
    %59 = vset.pattern.permute.xlu0 0
    %60 = vperm.xlu0 %59, %v19
    %v61 = vpop.permute.xlu0 %60
    %62 = vset.pattern.permute.xlu0 0
    %63 = vperm.xlu0 %62, %v20
    %v64 = vpop.permute.xlu0 %63
    %65 = vset.pattern.permute.xlu0 0
    %66 = vperm.xlu0 %65, %v21
    %v67 = vpop.permute.xlu0 %66
    %68 = vset.pattern.permute.xlu0 0
    %69 = vperm.xlu0 %68, %v22
    %v70 = vpop.permute.xlu0 %69
    %71 = vset.pattern.permute.xlu0 0
    %72 = vperm.xlu0 %71, %v23
    %v73 = vpop.permute.xlu0 %72
    %74 = vset.pattern.permute.xlu0 0
    %75 = vperm.xlu0 %74, %v24
    %v76 = vpop.permute.xlu0 %75
    %77 = vset.pattern.permute.xlu0 0
    %78 = vperm.xlu0 %77, %v25
    %v79 = vpop.permute.xlu0 %78
    %80 = vset.pattern.permute.xlu0 0
    %81 = vperm.xlu0 %80, %v26
    %v82 = vpop.permute.xlu0 %81
    %83 = vset.pattern.permute.xlu0 0
    %84 = vperm.xlu0 %83, %v27
    %v85 = vpop.permute.xlu0 %84
    %86 = vset.pattern.permute.xlu0 0
    %87 = vperm.xlu0 %86, %v28
    %v88 = vpop.permute.xlu0 %87
    %89 = vset.pattern.permute.xlu0 0
    %90 = vperm.xlu0 %89, %v29
    %v91 = vpop.permute.xlu0 %90
    %92 = vset.pattern.permute.xlu0 0
    %93 = vperm.xlu0 %92, %v30
    %v94 = vpop.permute.xlu0 %93
    %95 = vset.pattern.permute.xlu0 0
    %96 = vperm.xlu0 %95, %v31
    %v97 = vpop.permute.xlu0 %96
    %98 = vset.pattern.permute.xlu0 0
    %99 = vperm.xlu0 %98, %v32
    %v100 = vpop.permute.xlu0 %99
    %101 = vset.pattern.permute.xlu0 0
    %102 = vperm.xlu0 %101, %v33
    %v103 = vpop.permute.xlu0 %102
    %104 = vset.pattern.permute.xlu0 0
    %105 = vperm.xlu0 %104, %v34
    %v106 = vpop.permute.xlu0 %105
    %107 = vset.pattern.permute.xlu0 0
    %108 = vperm.xlu0 %107, %v35
    %v109 = vpop.permute.xlu0 %108
    %110 = vset.pattern.permute.xlu0 0
    %111 = vperm.xlu0 %110, %v36
    %v112 = vpop.permute.xlu0 %111
    %113 = vset.pattern.permute.xlu0 0
    %114 = vperm.xlu0 %113, %v37
    %v115 = vpop.permute.xlu0 %114
    %116 = vset.pattern.permute.xlu0 0
    %117 = vperm.xlu0 %116, %v38
    %v118 = vpop.permute.xlu0 %117
    %119 = vset.pattern.permute.xlu0 0
    %120 = vperm.xlu0 %119, %v39
    %v121 = vpop.permute.xlu0 %120
    %122 = vset.pattern.permute.xlu0 0
    %123 = vperm.xlu0 %122, %v40
    %v124 = vpop.permute.xlu0 %123
    %125 = vset.pattern.permute.xlu0 0
    %126 = vperm.xlu0 %125, %v41
    %v127 = vpop.permute.xlu0 %126
    %128 = vset.pattern.permute.xlu0 0
    %129 = vperm.xlu0 %128, %v42
    %v130 = vpop.permute.xlu0 %129
    %131 = vset.pattern.permute.xlu0 0
    %132 = vperm.xlu0 %131, %v43
    %v133 = vpop.permute.xlu0 %132
    %134 = vset.pattern.permute.xlu0 0
    %135 = vperm.xlu0 %134, %v44
    %v136 = vpop.permute.xlu0 %135
    %137 = vset.pattern.permute.xlu0 0
    %138 = vperm.xlu0 %137, %v45
    %v139 = vpop.permute.xlu0 %138
    %140 = vset.pattern.permute.xlu0 0
    %141 = vperm.xlu0 %140, %v46
    %v142 = vpop.permute.xlu0 %141
    %vm143 = vcmp.eq.s32.totalorder %v13, %v49
    %vm144 = vcmp.eq.s32.totalorder %v14, %v49
    %vm145 = vcmp.eq.s32.totalorder %v13, %v52
    %vm146 = vcmp.eq.s32.totalorder %v14, %v52
    %vm147 = vcmp.eq.s32.totalorder %v13, %v55
    %vm148 = vcmp.eq.s32.totalorder %v14, %v55
    %vm149 = vcmp.eq.s32.totalorder %v13, %v58
    %vm150 = vcmp.eq.s32.totalorder %v14, %v58
    %vm151 = vcmp.eq.s32.totalorder %v13, %v61
    %vm152 = vcmp.eq.s32.totalorder %v14, %v61
    %vm153 = vcmp.eq.s32.totalorder %v13, %v64
    %vm154 = vcmp.eq.s32.totalorder %v14, %v64
    %vm155 = vcmp.eq.s32.totalorder %v13, %v67
    %vm156 = vcmp.eq.s32.totalorder %v14, %v67
    %vm157 = vcmp.eq.s32.totalorder %v13, %v70
    %vm158 = vcmp.eq.s32.totalorder %v14, %v70
    %vm159 = vcmp.eq.s32.totalorder %v13, %v73
    %vm160 = vcmp.eq.s32.totalorder %v14, %v73
    %vm161 = vcmp.eq.s32.totalorder %v13, %v76
    %vm162 = vcmp.eq.s32.totalorder %v14, %v76
    %vm163 = vcmp.eq.s32.totalorder %v13, %v79
    %vm164 = vcmp.eq.s32.totalorder %v14, %v79
    %vm165 = vcmp.eq.s32.totalorder %v13, %v82
    %vm166 = vcmp.eq.s32.totalorder %v14, %v82
    %vm167 = vcmp.eq.s32.totalorder %v13, %v85
    %vm168 = vcmp.eq.s32.totalorder %v14, %v85
    %vm169 = vcmp.eq.s32.totalorder %v13, %v88
    %vm170 = vcmp.eq.s32.totalorder %v14, %v88
    %vm171 = vcmp.eq.s32.totalorder %v13, %v91
    %vm172 = vcmp.eq.s32.totalorder %v14, %v91
    %vm173 = vcmp.eq.s32.totalorder %v13, %v94
    %vm174 = vcmp.eq.s32.totalorder %v14, %v94
    %vm175 = vcmp.eq.s32.totalorder %v13, %v97
    %vm176 = vcmp.eq.s32.totalorder %v14, %v97
    %vm177 = vcmp.eq.s32.totalorder %v13, %v100
    %vm178 = vcmp.eq.s32.totalorder %v14, %v100
    %vm179 = vcmp.eq.s32.totalorder %v13, %v103
    %vm180 = vcmp.eq.s32.totalorder %v14, %v103
    %vm181 = vcmp.eq.s32.totalorder %v13, %v106
    %vm182 = vcmp.eq.s32.totalorder %v14, %v106
    %vm183 = vcmp.eq.s32.totalorder %v13, %v109
    %vm184 = vcmp.eq.s32.totalorder %v14, %v109
    %vm185 = vcmp.eq.s32.totalorder %v13, %v112
    %vm186 = vcmp.eq.s32.totalorder %v14, %v112
    %vm187 = vcmp.eq.s32.totalorder %v13, %v115
    %vm188 = vcmp.eq.s32.totalorder %v14, %v115
    %vm189 = vcmp.eq.s32.totalorder %v13, %v118
    %vm190 = vcmp.eq.s32.totalorder %v14, %v118
    %vm191 = vcmp.eq.s32.totalorder %v13, %v121
    %vm192 = vcmp.eq.s32.totalorder %v14, %v121
    %vm193 = vcmp.eq.s32.totalorder %v13, %v124
    %vm194 = vcmp.eq.s32.totalorder %v14, %v124
    %vm195 = vcmp.eq.s32.totalorder %v13, %v127
    %vm196 = vcmp.eq.s32.totalorder %v14, %v127
    %vm197 = vcmp.eq.s32.totalorder %v13, %v130
    %vm198 = vcmp.eq.s32.totalorder %v14, %v130
    %vm199 = vcmp.eq.s32.totalorder %v13, %v133
    %vm200 = vcmp.eq.s32.totalorder %v14, %v133
    %vm201 = vcmp.eq.s32.totalorder %v13, %v136
    %vm202 = vcmp.eq.s32.totalorder %v14, %v136
    %vm203 = vcmp.eq.s32.totalorder %v13, %v139
    %vm204 = vcmp.eq.s32.totalorder %v14, %v139
    %vm205 = vcmp.eq.s32.totalorder %v13, %v142
    %vm206 = vcmp.eq.s32.totalorder %v14, %v142
    %v207 = vsel %vm143, 1, 0
    %v208 = vsel %vm144, 1, 0
    %v209 = vsel %vm145, 1, 0
    %v210 = vsel %vm146, 1, 0
    %v211 = vsel %vm147, 1, 0
    %v212 = vsel %vm148, 1, 0
    %v213 = vsel %vm149, 1, 0
    %v214 = vsel %vm150, 1, 0
    %v215 = vsel %vm151, 1, 0
    %v216 = vsel %vm152, 1, 0
    %v217 = vsel %vm153, 1, 0
    %v218 = vsel %vm154, 1, 0
    %v219 = vsel %vm155, 1, 0
    %v220 = vsel %vm156, 1, 0
    %v221 = vsel %vm157, 1, 0
    %v222 = vsel %vm158, 1, 0
    %v223 = vsel %vm159, 1, 0
    %v224 = vsel %vm160, 1, 0
    %v225 = vsel %vm161, 1, 0
    %v226 = vsel %vm162, 1, 0
    %v227 = vsel %vm163, 1, 0
    %v228 = vsel %vm164, 1, 0
    %v229 = vsel %vm165, 1, 0
    %v230 = vsel %vm166, 1, 0
    %v231 = vsel %vm167, 1, 0
    %v232 = vsel %vm168, 1, 0
    %v233 = vsel %vm169, 1, 0
    %v234 = vsel %vm170, 1, 0
    %v235 = vsel %vm171, 1, 0
    %v236 = vsel %vm172, 1, 0
    %v237 = vsel %vm173, 1, 0
    %v238 = vsel %vm174, 1, 0
    %v239 = vsel %vm175, 1, 0
    %v240 = vsel %vm176, 1, 0
    %v241 = vsel %vm177, 1, 0
    %v242 = vsel %vm178, 1, 0
    %v243 = vsel %vm179, 1, 0
    %v244 = vsel %vm180, 1, 0
    %v245 = vsel %vm181, 1, 0
    %v246 = vsel %vm182, 1, 0
    %v247 = vsel %vm183, 1, 0
    %v248 = vsel %vm184, 1, 0
    %v249 = vsel %vm185, 1, 0
    %v250 = vsel %vm186, 1, 0
    %v251 = vsel %vm187, 1, 0
    %v252 = vsel %vm188, 1, 0
    %v253 = vsel %vm189, 1, 0
    %v254 = vsel %vm190, 1, 0
    %v255 = vsel %vm191, 1, 0
    %v256 = vsel %vm192, 1, 0
    %v257 = vsel %vm193, 1, 0
    %v258 = vsel %vm194, 1, 0
    %v259 = vsel %vm195, 1, 0
    %v260 = vsel %vm196, 1, 0
    %v261 = vsel %vm197, 1, 0
    %v262 = vsel %vm198, 1, 0
    %v263 = vsel %vm199, 1, 0
    %v264 = vsel %vm200, 1, 0
    %v265 = vsel %vm201, 1, 0
    %v266 = vsel %vm202, 1, 0
    %v267 = vsel %vm203, 1, 0
    %v268 = vsel %vm204, 1, 0
    %v269 = vsel %vm205, 1, 0
    %v270 = vsel %vm206, 1, 0
    %v271 = vcvt.s32.f32 %v207
    %v272 = vcvt.s32.f32 %v208
    %v273 = vcvt.s32.f32 %v209
    %v274 = vcvt.s32.f32 %v210
    %v275 = vcvt.s32.f32 %v211
    %v276 = vcvt.s32.f32 %v212
    %v277 = vcvt.s32.f32 %v213
    %v278 = vcvt.s32.f32 %v214
    %v279 = vcvt.s32.f32 %v215
    %v280 = vcvt.s32.f32 %v216
    %v281 = vcvt.s32.f32 %v217
    %v282 = vcvt.s32.f32 %v218
    %v283 = vcvt.s32.f32 %v219
    %v284 = vcvt.s32.f32 %v220
    %v285 = vcvt.s32.f32 %v221
    %v286 = vcvt.s32.f32 %v222
    %v287 = vcvt.s32.f32 %v223
    %v288 = vcvt.s32.f32 %v224
    %v289 = vcvt.s32.f32 %v225
    %v290 = vcvt.s32.f32 %v226
    %v291 = vcvt.s32.f32 %v227
    %v292 = vcvt.s32.f32 %v228
    %v293 = vcvt.s32.f32 %v229
    %v294 = vcvt.s32.f32 %v230
    %v295 = vcvt.s32.f32 %v231
    %v296 = vcvt.s32.f32 %v232
    %v297 = vcvt.s32.f32 %v233
    %v298 = vcvt.s32.f32 %v234
    %v299 = vcvt.s32.f32 %v235
    %v300 = vcvt.s32.f32 %v236
    %v301 = vcvt.s32.f32 %v237
    %v302 = vcvt.s32.f32 %v238
    %v303 = vcvt.s32.f32 %v239
    %v304 = vcvt.s32.f32 %v240
    %v305 = vcvt.s32.f32 %v241
    %v306 = vcvt.s32.f32 %v242
    %v307 = vcvt.s32.f32 %v243
    %v308 = vcvt.s32.f32 %v244
    %v309 = vcvt.s32.f32 %v245
    %v310 = vcvt.s32.f32 %v246
    %v311 = vcvt.s32.f32 %v247
    %v312 = vcvt.s32.f32 %v248
    %v313 = vcvt.s32.f32 %v249
    %v314 = vcvt.s32.f32 %v250
    %v315 = vcvt.s32.f32 %v251
    %v316 = vcvt.s32.f32 %v252
    %v317 = vcvt.s32.f32 %v253
    %v318 = vcvt.s32.f32 %v254
    %v319 = vcvt.s32.f32 %v255
    %v320 = vcvt.s32.f32 %v256
    %v321 = vcvt.s32.f32 %v257
    %v322 = vcvt.s32.f32 %v258
    %v323 = vcvt.s32.f32 %v259
    %v324 = vcvt.s32.f32 %v260
    %v325 = vcvt.s32.f32 %v261
    %v326 = vcvt.s32.f32 %v262
    %v327 = vcvt.s32.f32 %v263
    %v328 = vcvt.s32.f32 %v264
    %v329 = vcvt.s32.f32 %v265
    %v330 = vcvt.s32.f32 %v266
    %v331 = vcvt.s32.f32 %v267
    %v332 = vcvt.s32.f32 %v268
    %v333 = vcvt.s32.f32 %v269
    %v334 = vcvt.s32.f32 %v270
    %v335 = vld [vmem:[%s1] sm:$0xff]
    %v336 = vld [vmem:[%s1 + $0x8] sm:$0xff]
    %v337 = vld [vmem:[%s1 + $0x10] sm:$0xff]
    %v338 = vld [vmem:[%s1 + $0x18] sm:$0xff]
    %v339 = vld [vmem:[%s1 + $0x20] sm:$0xff]
    %v340 = vld [vmem:[%s1 + $0x28] sm:$0xff]
    %v341 = vld [vmem:[%s1 + $0x30] sm:$0xff]
    %v342 = vld [vmem:[%s1 + $0x38] sm:$0xff]
    %343 = vmatprep.subr.mxu0 %v272
    %344 = vmatpush1.msra.mxu0 %v271
    %345 = vmatprep.subr.mxu0 %v274
    %346 = vmatpush1.msra.mxu0 %v273
    %347 = vmatprep.subr.mxu0 %v276
    %348 = vmatpush1.msra.mxu0 %v275
    %349 = vmatprep.subr.mxu0 %v278
    %350 = vmatpush1.msra.mxu0 %v277
    %351 = vmatprep.subr.mxu0 %v280
    %352 = vmatpush1.msra.mxu0 %v279
    %353 = vmatprep.subr.mxu0 %v282
    %354 = vmatpush1.msra.mxu0 %v281
    %355 = vmatprep.subr.mxu0 %v284
    %356 = vmatpush1.msra.mxu0 %v283
    %357 = vmatprep.subr.mxu0 %v286
    %358 = vmatpush1.msra.mxu0 %v285
    %359 = vmatprep.subr.mxu0 %v288
    %360 = vmatpush1.msra.mxu0 %v287
    %361 = vmatprep.subr.mxu0 %v290
    %362 = vmatpush1.msra.mxu0 %v289
    %363 = vmatprep.subr.mxu0 %v292
    %364 = vmatpush1.msra.mxu0 %v291
    %365 = vmatprep.subr.mxu0 %v294
    %366 = vmatpush1.msra.mxu0 %v293
    %367 = vmatprep.subr.mxu0 %v296
    %368 = vmatpush1.msra.mxu0 %v295
    %369 = vmatprep.subr.mxu0 %v298
    %370 = vmatpush1.msra.mxu0 %v297
    %371 = vmatprep.subr.mxu0 %v300
    %372 = vmatpush1.msra.mxu0 %v299
    %373 = vmatprep.subr.mxu0 %v302
    %374 = vmatpush1.msra.mxu0 %v301
    %375 = vmatprep.subr.mxu0 %v304
    %376 = vmatpush1.msra.mxu0 %v303
    %377 = vmatprep.subr.mxu0 %v306
    %378 = vmatpush1.msra.mxu0 %v305
    %379 = vmatprep.subr.mxu0 %v308
    %380 = vmatpush1.msra.mxu0 %v307
    %381 = vmatprep.subr.mxu0 %v310
    %382 = vmatpush1.msra.mxu0 %v309
    %383 = vmatprep.subr.mxu0 %v312
    %384 = vmatpush1.msra.mxu0 %v311
    %385 = vmatprep.subr.mxu0 %v314
    %386 = vmatpush1.msra.mxu0 %v313
    %387 = vmatprep.subr.mxu0 %v316
    %388 = vmatpush1.msra.mxu0 %v315
    %389 = vmatprep.subr.mxu0 %v318
    %390 = vmatpush1.msra.mxu0 %v317
    %391 = vmatprep.subr.mxu0 %v320
    %392 = vmatpush1.msra.mxu0 %v319
    %393 = vmatprep.subr.mxu0 %v322
    %394 = vmatpush1.msra.mxu0 %v321
    %395 = vmatprep.subr.mxu0 %v324
    %396 = vmatpush1.msra.mxu0 %v323
    %397 = vmatprep.subr.mxu0 %v326
    %398 = vmatpush1.msra.mxu0 %v325
    %399 = vmatprep.subr.mxu0 %v328
    %400 = vmatpush1.msra.mxu0 %v327
    %401 = vmatprep.subr.mxu0 %v330
    %402 = vmatpush1.msra.mxu0 %v329
    %403 = vmatprep.subr.mxu0 %v332
    %404 = vmatpush1.msra.mxu0 %v331
    %405 = vmatprep.subr.mxu0 %v334
    %406 = vmatpush1.msra.mxu0 %v333
    %407 = vmatprep.mubr.f32.mxu0 %v336
    %408 = vmatmul.mubr.f32.gmra.mrb[0].mxu0 %v335
    %v409 = vpop.f32.mrb[0].mxu0
    %v410 = vadd.f32 0.0, %v409
    %v411 = vpop.f32.mrb[0].mxu0
    %v412 = vadd.f32 0.0, %v411
    %413 = vmatprep.mubr.f32.mxu0 %v338
    %414 = vmatmul.mubr.f32.gmra.mrb[0].mxu0 %v337
    %v415 = vpop.f32.mrb[0].mxu0
    %v416 = vadd.f32 0.0, %v415
    %v417 = vpop.f32.mrb[0].mxu0
    %v418 = vadd.f32 0.0, %v417
    %419 = vmatprep.mubr.f32.mxu0 %v340
    %420 = vmatmul.mubr.f32.gmra.mrb[0].mxu0 %v339
    %v421 = vpop.f32.mrb[0].mxu0
    %v422 = vadd.f32 0.0, %v421
    %v423 = vpop.f32.mrb[0].mxu0
    %v424 = vadd.f32 0.0, %v423
    %425 = vmatprep.mubr.f32.mxu0 %v342
    %426 = vmatmul.mubr.f32.gmra.mrb[0].mxu0 %v341
    %v427 = vpop.f32.mrb[0].mxu0
    %v428 = vadd.f32 0.0, %v427
    %v429 = vpop.f32.mrb[0].mxu0
    %v430 = vadd.f32 0.0, %v429
    %431 = vdwg.mxu0
    %432 = vst [vmem:[#allocation2] sm:$0xff] %v410
    %433 = vst [vmem:[#allocation2 + $0x8] sm:$0xff] %v412
    %434 = vst [vmem:[#allocation2 + $0x10] sm:$0xff] %v416
    %435 = vst [vmem:[#allocation2 + $0x18] sm:$0xff] %v418
    %436 = vst [vmem:[#allocation2 + $0x20] sm:$0xff] %v422
    %437 = vst [vmem:[#allocation2 + $0x28] sm:$0xff] %v424
    %438 = vst [vmem:[#allocation2 + $0x30] sm:$0xff] %v428
    %439 = vst [vmem:[#allocation2 + $0x38] sm:$0xff] %v430
    // Predicated region
    $region10: #{tpu_custom_call.1} parent=1 // pred_check
      _
    $region11: #{tpu_custom_call.1} parent=1 // pred_check_branch
      %441 = sbr.rel (0) target = $region13
    $region12: #{tpu_custom_call.1} parent=1 // pred_region
      %s443 = ssub.s32 1024, 1024
      %444 = vsyncadd [#allocation3], %s443
      %s445 = sshll.u32 [#allocation2], 4
      %s446 = int_to_ptr.vmem [resolvable:$true] %s445
      %451 = dma.vmem_to_hbm [thread:$0]  %s446, 1024, %s2, [#allocation3], 256, 256, 16
    $region13: #{tpu_custom_call.1} parent=1 // pred_fallthru
      _
    // Predicated region
    $region14: #{tpu_custom_call.1} parent=1 // pred_check
      _
    $region15: #{tpu_custom_call.1} parent=1 // pred_check_branch
      %453 = sbr.rel (0) target = $region17
    $region16: #{tpu_custom_call.1} parent=1 // pred_region
      %454 = dma.done [#allocation3], 1024
    $region17: #{tpu_custom_call.1} parent=1 // pred_fallthru
      _
    %455 = vsyncpa [#allocation3], 1

</llo_original>
